<compile_context>
chip_gen: v5e
topology: v5e:2x2
jax: 0.10.0
libtpu: 0.0.40
codegen_flags: <defaults>
</compile_context>

<pallas_src>
import math
import jax
import jax.numpy as jnp
from jax import lax
from jax.experimental import pallas as pl
from jax.experimental.pallas import tpu as pltpu


# ----------------------------------------------------------------------------
# Fused Pallas kernel: full SGD adaptation loop + query scoring
# ----------------------------------------------------------------------------
def _vmem_spec():
    return pl.BlockSpec(memory_space=pltpu.MemorySpace.VMEM)


def _make_adapt_kernel(n_steps, lr, momentum, dampening, weight_decay):
    """Build the fused kernel with static hyper-parameters baked in."""

    def kernel(z_sup_ref, y_t_ref, mask_ref, z_qry_ref, w0_ref, b0_ref, o_ref):
        # z_sup: (S, D)   support features            (VMEM, read once)
        # y_t  : (C, S)   one-hot targets, transposed (VMEM, read once)
        # mask : (T, S)   per-step selection mask already scaled by 1/batch
        # z_qry: (Nq, D)  query features
        # w0   : (C, D)   classifier weight init
        # b0   : (C, 1)   classifier bias init (column form)
        # out  : (C, Nq)  query scores, transposed
        z = z_sup_ref[...]
        y_t = y_t_ref[...]

        def step(i, carry):
            w, b, mw, mb = carry                       # (C,D) (C,1) (C,D) (C,1)
            # logits^T = W @ z^T + b  : (C, S), no operand transposes
            logits = lax.dot_general(
                w, z, (((1,), (1,)), ((), ())),
                preferred_element_type=jnp.float32) + b
            # softmax over classes (sublane axis)
            m = jnp.max(logits, axis=0, keepdims=True)        # (1, S)
            e = jnp.exp(logits - m)                           # (C, S)
            p = e / jnp.sum(e, axis=0, keepdims=True)         # (C, S)
            # selection mask for this step, pre-scaled by 1/rows_in_batch.
            # (1, S) broadcasts over sublanes for free.
            msk = mask_ref[pl.ds(i, 1), :]
            g = (p - y_t) * msk                               # d(mean CE)/dlogits^T
            # dW = g @ z : (C, D);   db = row-sum of g : (C, 1)
            dw = lax.dot_general(
                g, z, (((1,), (0,)), ((), ())),
                preferred_element_type=jnp.float32)
            db = jnp.sum(g, axis=1, keepdims=True)
            # PyTorch SGD: d_p = grad + wd*p ; buf = mom*buf + (1-damp)*d_p
            # (buf initialized to d_p on the very first step)
            gw = dw + weight_decay * w
            gb = db + weight_decay * b
            first = i == 0
            mw = jnp.where(first, gw, momentum * mw + (1.0 - dampening) * gw)
            mb = jnp.where(first, gb, momentum * mb + (1.0 - dampening) * gb)
            return (w - lr * mw, b - lr * mb, mw, mb)

        w0 = w0_ref[...]
        b0 = b0_ref[...]
        w, b, _, _ = lax.fori_loop(
            0, n_steps, step,
            (w0, b0, jnp.zeros_like(w0), jnp.zeros_like(b0)))

        # Final query scoring, still fused: scores^T = W @ z_qry^T + b
        zq = z_qry_ref[...]
        o_ref[...] = lax.dot_general(
            w, zq, (((1,), (1,)), ((), ())),
            preferred_element_type=jnp.float32) + b

    return kernel


def pallas_adapt_and_score(z_sup, y_t, mask_scaled, z_qry, w0, b0,
                           *, lr, momentum, dampening, weight_decay):
    n_steps = mask_scaled.shape[0]
    n_way = w0.shape[0]
    nq = z_qry.shape[0]
    kernel = _make_adapt_kernel(n_steps, lr, momentum, dampening, weight_decay)
    scores_t = pl.pallas_call(
        kernel,
        out_shape=jax.ShapeDtypeStruct((n_way, nq), jnp.float32),
        in_specs=[_vmem_spec()] * 6,
        out_specs=_vmem_spec(),
    )(z_sup, y_t, mask_scaled, z_qry, w0, b0)
    return scores_t.T  # (Nq, n_way), trivial XLA transpose once


# ----------------------------------------------------------------------------
# MetaTemplate equivalent
# ----------------------------------------------------------------------------
class MetaTemplatePallas:
    def __init__(self, n_way, n_support, feat_dim, change_way=True):
        self.n_way = n_way
        self.n_support = n_support
        self.n_query = -1
        self.feat_dim = feat_dim
        self.change_way = change_way

    def parse_feature(self, x):
        # x: [n_way, n_support + n_query, feat_dim]
        z_support = x[:, : self.n_support]
        z_query = x[:, self.n_support:]
        return z_support, z_query

    def set_forward_adaptation(self, x, key):
        self.n_query = x.shape[1] - self.n_support
        z_support, z_query = self.parse_feature(x)
        z_support = z_support.reshape(self.n_way * self.n_support, -1)
        z_query = z_query.reshape(self.n_way * self.n_query, -1)

        n_way, feat_dim = self.n_way, self.feat_dim
        support_size = self.n_way * self.n_support
        batch_size = 4
        n_epochs = 100
        n_batches = math.ceil(support_size / batch_size)
        lr, momentum, dampening, weight_decay = 0.01, 0.9, 0.9, 0.001

        k_w, k_b, k_perm = jax.random.split(key, 3)

        @jax.jit
        def adapt(z_sup, z_qry, k_w, k_b, k_perm):
            # Deterministic linear-classifier init:
            # nn.Linear default U(-1/sqrt(D), 1/sqrt(D)) for weight and bias.
            bound = 1.0 / math.sqrt(feat_dim)
            w0 = jax.random.uniform(k_w, (n_way, feat_dim), jnp.float32,
                                    -bound, bound)
            b0 = jax.random.uniform(k_b, (n_way, 1), jnp.float32,
                                    -bound, bound)

            # One-hot support targets, stored transposed: (C, S)
            y_support = jnp.repeat(jnp.arange(n_way, dtype=jnp.int32),
                                   self.n_support)
            y_t = jax.nn.one_hot(y_support, n_way, dtype=jnp.float32).T

            # Per-epoch permutations -> per-step selection masks over the full
            # support set, pre-scaled by 1/rows_in_batch (folds the CE mean).
            perm_keys = jax.random.split(k_perm, n_epochs)
            perms = jax.vmap(
                lambda k: jax.random.permutation(k, support_size))(perm_keys)
            inv = jnp.argsort(perms, axis=1)               # position of each row
            batch_of_row = inv // batch_size               # (E, S)
            bids = jnp.arange(n_batches)
            rows_in_batch = jnp.minimum(
                batch_size, support_size - bids * batch_size
            ).astype(jnp.float32)                          # (B,)
            sel = (batch_of_row[:, None, :] == bids[None, :, None]
                   ).astype(jnp.float32)                   # (E, B, S)
            mask_scaled = (sel / rows_in_batch[None, :, None]).reshape(
                n_epochs * n_batches, support_size)        # (T, S)

            return pallas_adapt_and_score(
                z_sup, y_t, mask_scaled, z_qry, w0, b0,
                lr=lr, momentum=momentum, dampening=dampening,
                weight_decay=weight_decay)

        return adapt(z_support, z_query, k_w, k_b, k_perm)


if __name__ == "__main__":
    n_way, n_support, n_query, feat_dim = 5, 5, 3, 64
    key = jax.random.PRNGKey(0)
    k_x, k_clf = jax.random.split(key)
    # x: pre-extracted features [n_way, n_support + n_query, feat_dim]
    x = jax.random.normal(k_x, (n_way, n_support + n_query, feat_dim),
                          jnp.float32)

    model = MetaTemplatePallas(n_way=n_way, n_support=n_support,
                               feat_dim=feat_dim)
    scores = model.set_forward_adaptation(x, k_clf)
    scores = jax.block_until_ready(scores)
    assert scores.shape == (n_way * n_query, n_way)
    assert jnp.all(jnp.isfinite(scores))
    print("KERNEL_OK")
</pallas_src>

<mosaic_0001>
module attributes {stable_mosaic.version = 11 : i64} {
  func.func @kernel(%arg0: memref<25x64xf32, #tpu.memory_space<vmem>>, %arg1: memref<5x25xf32, #tpu.memory_space<vmem>>, %arg2: memref<700x25xf32, #tpu.memory_space<vmem>>, %arg3: memref<15x64xf32, #tpu.memory_space<vmem>>, %arg4: memref<5x64xf32, #tpu.memory_space<vmem>>, %arg5: memref<5x1xf32, #tpu.memory_space<vmem>>, %arg6: memref<5x15xf32, #tpu.memory_space<vmem>>) attributes {dimension_semantics = [], scalar_prefetch = 0 : i64, scratch_operands = 0 : i64, tpu.core_type = #tpu.core_type<tc>} {
    %c0 = arith.constant 0 : index
    %c0_0 = arith.constant 0 : index
    %0 = vector.load %arg0[%c0, %c0_0] : memref<25x64xf32, #tpu.memory_space<vmem>>, vector<25x64xf32>
    %c0_1 = arith.constant 0 : index
    %c0_2 = arith.constant 0 : index
    %1 = vector.load %arg1[%c0_1, %c0_2] : memref<5x25xf32, #tpu.memory_space<vmem>>, vector<5x25xf32>
    %c0_3 = arith.constant 0 : index
    %c0_4 = arith.constant 0 : index
    %2 = vector.load %arg4[%c0_3, %c0_4] : memref<5x64xf32, #tpu.memory_space<vmem>>, vector<5x64xf32>
    %c0_5 = arith.constant 0 : index
    %c0_6 = arith.constant 0 : index
    %3 = vector.load %arg5[%c0_5, %c0_6] : memref<5x1xf32, #tpu.memory_space<vmem>>, vector<5x1xf32>
    %cst = arith.constant 0.000000e+00 : f32
    %4 = vector.broadcast %cst : f32 to vector<5x64xf32>
    %cst_7 = arith.constant 0.000000e+00 : f32
    %5 = vector.broadcast %cst_7 : f32 to vector<5x1xf32>
    %c0_i32 = arith.constant 0 : i32
    %c700_i32 = arith.constant 700 : i32
    %6 = arith.addi %c0_i32, %c700_i32 : i32
    %c1_i32 = arith.constant 1 : i32
    %7:4 = scf.for %arg7 = %c0_i32 to %6 step %c1_i32 iter_args(%arg8 = %2, %arg9 = %3, %arg10 = %4, %arg11 = %5) -> (vector<5x64xf32>, vector<5x1xf32>, vector<5x64xf32>, vector<5x1xf32>)  : i32 {
      %cst_14 = arith.constant dense<0.000000e+00> : vector<5x25xf32>
      %13 = tpu.matmul %arg8, %0, %cst_14 {dimension_numbers = #tpu.dot_dimension_numbers<[1], [1], [0], [0], [0, 0, 1, 0], [], []>} : vector<5x64xf32>, vector<25x64xf32>, vector<5x25xf32> -> vector<5x25xf32>
      %14 = vector.broadcast %arg9 : vector<5x1xf32> to vector<5x25xf32>
      %15 = arith.addf %13, %14 : vector<5x25xf32>
      %cst_15 = arith.constant dense<0xFF800000> : vector<25xf32>
      %16 = vector.multi_reduction <maximumf>, %15, %cst_15 [0] : vector<5x25xf32> to vector<25xf32>
      %17 = vector.shape_cast %16 : vector<25xf32> to vector<1x25xf32>
      %18 = vector.broadcast %17 : vector<1x25xf32> to vector<5x25xf32>
      %19 = arith.subf %15, %18 : vector<5x25xf32>
      %20 = math.exp %19 : vector<5x25xf32>
      %cst_16 = arith.constant dense<0.000000e+00> : vector<25xf32>
      %21 = vector.multi_reduction <add>, %20, %cst_16 [0] : vector<5x25xf32> to vector<25xf32>
      %22 = vector.shape_cast %21 : vector<25xf32> to vector<1x25xf32>
      %23 = vector.broadcast %22 : vector<1x25xf32> to vector<5x25xf32>
      %24 = arith.divf %20, %23 : vector<5x25xf32>
      %25 = arith.index_cast %arg7 : i32 to index
      %c0_17 = arith.constant 0 : index
      %26 = vector.load %arg2[%25, %c0_17] : memref<700x25xf32, #tpu.memory_space<vmem>>, vector<1x25xf32>
      %27 = arith.subf %24, %1 : vector<5x25xf32>
      %28 = vector.broadcast %26 : vector<1x25xf32> to vector<5x25xf32>
      %29 = arith.mulf %27, %28 : vector<5x25xf32>
      %cst_18 = arith.constant dense<0.000000e+00> : vector<5x64xf32>
      %30 = tpu.matmul %29, %0, %cst_18 {dimension_numbers = #tpu.dot_dimension_numbers<[1], [0], [0], [1], [0, 0, 1, 1], [], []>} : vector<5x25xf32>, vector<25x64xf32>, vector<5x64xf32> -> vector<5x64xf32>
      %cst_19 = arith.constant dense<0.000000e+00> : vector<5xf32>
      %31 = vector.multi_reduction <add>, %29, %cst_19 [1] : vector<5x25xf32> to vector<5xf32>
      %32 = vector.shape_cast %31 : vector<5xf32> to vector<5x1xf32>
      %cst_20 = arith.constant 1.000000e-03 : f32
      %33 = vector.broadcast %cst_20 : f32 to vector<5x64xf32>
      %34 = arith.mulf %33, %arg8 : vector<5x64xf32>
      %35 = arith.addf %30, %34 : vector<5x64xf32>
      %cst_21 = arith.constant 1.000000e-03 : f32
      %36 = vector.broadcast %cst_21 : f32 to vector<5x1xf32>
      %37 = arith.mulf %36, %arg9 : vector<5x1xf32>
      %38 = arith.addf %32, %37 : vector<5x1xf32>
      %c0_i32_22 = arith.constant 0 : i32
      %39 = arith.cmpi eq, %arg7, %c0_i32_22 : i32
      %cst_23 = arith.constant 0.899999976 : f32
      %40 = vector.broadcast %cst_23 : f32 to vector<5x64xf32>
      %41 = arith.mulf %40, %arg10 : vector<5x64xf32>
      %cst_24 = arith.constant 1.000000e-01 : f32
      %42 = vector.broadcast %cst_24 : f32 to vector<5x64xf32>
      %43 = arith.mulf %42, %35 : vector<5x64xf32>
      %44 = arith.addf %41, %43 : vector<5x64xf32>
      %45 = arith.select %39, %35, %44 : vector<5x64xf32>
      %cst_25 = arith.constant 0.899999976 : f32
      %46 = vector.broadcast %cst_25 : f32 to vector<5x1xf32>
      %47 = arith.mulf %46, %arg11 : vector<5x1xf32>
      %cst_26 = arith.constant 1.000000e-01 : f32
      %48 = vector.broadcast %cst_26 : f32 to vector<5x1xf32>
      %49 = arith.mulf %48, %38 : vector<5x1xf32>
      %50 = arith.addf %47, %49 : vector<5x1xf32>
      %51 = arith.select %39, %38, %50 : vector<5x1xf32>
      %cst_27 = arith.constant 0.00999999977 : f32
      %52 = vector.broadcast %cst_27 : f32 to vector<5x64xf32>
      %53 = arith.mulf %52, %45 : vector<5x64xf32>
      %54 = arith.subf %arg8, %53 : vector<5x64xf32>
      %cst_28 = arith.constant 0.00999999977 : f32
      %55 = vector.broadcast %cst_28 : f32 to vector<5x1xf32>
      %56 = arith.mulf %55, %51 : vector<5x1xf32>
      %57 = arith.subf %arg9, %56 : vector<5x1xf32>
      scf.yield %54, %57, %45, %51 : vector<5x64xf32>, vector<5x1xf32>, vector<5x64xf32>, vector<5x1xf32>
    }
    %c700_i32_8 = arith.constant 700 : i32
    %c0_9 = arith.constant 0 : index
    %c0_10 = arith.constant 0 : index
    %8 = vector.load %arg3[%c0_9, %c0_10] : memref<15x64xf32, #tpu.memory_space<vmem>>, vector<15x64xf32>
    %cst_11 = arith.constant dense<0.000000e+00> : vector<5x15xf32>
    %9 = tpu.matmul %7#0, %8, %cst_11 {dimension_numbers = #tpu.dot_dimension_numbers<[1], [1], [0], [0], [0, 0, 1, 0], [], []>} : vector<5x64xf32>, vector<15x64xf32>, vector<5x15xf32> -> vector<5x15xf32>
    %10 = vector.broadcast %7#1 : vector<5x1xf32> to vector<5x15xf32>
    %11 = arith.addf %9, %10 : vector<5x15xf32>
    %c0_12 = arith.constant 0 : index
    %c0_13 = arith.constant 0 : index
    %12 = vector.load %arg6[%c0_12, %c0_13] : memref<5x15xf32, #tpu.memory_space<vmem>>, vector<5x15xf32>
    tpu.vector_store %arg6[%c0_12, %c0_13], %11 {strides = array<i32>} : memref<5x15xf32, #tpu.memory_space<vmem>>, vector<5x15xf32>,
    return
  }
}

</mosaic_0001>

<llo_original>
// kernel: eq.1
$region0: #{eq.1}
  %s0 = inlined_call_operand.vmem [shape: s32[5,5], index: 0, kind: input, shape index: {}]
  %s1 = inlined_call_operand.vmem [shape: s32[25], index: 1, kind: output, shape index: {}]
  $region1: #{eq.1} parent=0
    #allocation0 [shape = 'u8[4096]{0}', space=vmem, size = 0x1000, scoped, tag = 'scoped mem for output reshape']
    %v2 = vld [vmem:[%s0] sm:$0x1]
    %vm3 = vcmask 39936
    %4 = vst.msk [vmem:[#allocation0] sm:$0x1] %vm3, %v2
    %s5 = scalar_lea.vmem %s0, 4
    %v6 = vld [vmem:[%s5] sm:$0x1]
    %7 = vrot.lane.b32.xlu0 %v6, 20
    %v8 = vpop.permute.xlu0 %7
    %vm9 = vcmask 203936
    %10 = vst.msk [vmem:[#allocation0] sm:$0x1] %vm9, %v8
    %s11 = scalar_lea.vmem %s0, 3
    %v12 = vld [vmem:[%s11] sm:$0x1]
    %13 = vrot.lane.b32.xlu0 %v12, 15
    %v14 = vpop.permute.xlu0 %13
    %vm15 = vcmask 162936
    %16 = vst.msk [vmem:[#allocation0] sm:$0x1] %vm15, %v14
    %s17 = scalar_lea.vmem %s0, 2
    %v18 = vld [vmem:[%s17] sm:$0x1]
    %19 = vrot.lane.b32.xlu0 %v18, 10
    %v20 = vpop.permute.xlu0 %19
    %vm21 = vcmask 121936
    %22 = vst.msk [vmem:[#allocation0] sm:$0x1] %vm21, %v20
    %s23 = scalar_lea.vmem %s0, 1
    %v24 = vld [vmem:[%s23] sm:$0x1]
    %25 = vrot.lane.b32.xlu0 %v24, 5
    %v26 = vpop.permute.xlu0 %25
    %vm27 = vcmask 80936
    %28 = vst.msk [vmem:[#allocation0] sm:$0x1] %vm27, %v26
    %s30 = ssub.s32 2, 1
    %v31 = vld [vmem:[#allocation0] sm:%s30]
    %s33 = ssub.s32 2, 1
    %34 = vst [vmem:[%s1] sm:%s33] %v31

// kernel: adapt.1
$region0: #{adapt.1}
  #allocation0 [shape = 'u32[]', space=smem, size = 0x4, offset = 0x4, fixed_abs, tag = 'smem constant byte address 0x4 - core index']
  #allocation1 [shape = 'u32[72,128]{1,0:T(1,128)}', space=vmem, size = 0x9000, scoped, tag = 'internal scratch']
  %s0 = inlined_call_operand.vmem [shape: f32[25,64], index: 0, kind: input, shape index: {}]
  %s1 = inlined_call_operand.vmem [shape: f32[5,25], index: 1, kind: input, shape index: {}]
  %s2 = inlined_call_operand.vmem [shape: f32[700,25], index: 2, kind: input, shape index: {}]
  %s3 = inlined_call_operand.vmem [shape: f32[15,64], index: 3, kind: input, shape index: {}]
  %s4 = inlined_call_operand.vmem [shape: f32[5,64], index: 4, kind: input, shape index: {}]
  %s5 = inlined_call_operand.vmem [shape: f32[5,1], index: 5, kind: input, shape index: {}]
  %s6 = inlined_call_operand.hbm [shape: f32[5,15], index: 6, kind: output, shape index: {}]
  %s7 = sld [smem:[#allocation0]]
  $region41: #{adapt.1} parent=0
    _
  %s9 = ssub.s32 1, %s7
  %s10 = scalar_select 0, %s9, %s7
  $region1: #{adapt.1} parent=0
    #allocation2 [shape = 'u8[4096]{0}', space=vmem, size = 0x1000, scoped, tag = 'output window, operand 0, single buffered']
    #allocation3 [shape = 's32[1]{0}', space=sflag, size = 0x4, scoped, tag = 'scoped memory for adapt.1']
    %11 = vsyncpa [#allocation3], 0
    // Predicated region
    $region2: #{adapt.1} parent=1 // pred_check
      _
    $region3: #{adapt.1} parent=1 // pred_check_branch
      %13 = sbr.rel (0) target = $region5
    $region4: #{adapt.1} parent=1 // pred_region
      _
    $region5: #{adapt.1} parent=1 // pred_fallthru
      _
    // Predicated region
    $region6: #{adapt.1} parent=1 // pred_check
      _
    $region7: #{adapt.1} parent=1 // pred_check_branch
      %15 = sbr.rel (0) target = $region9
    $region8: #{adapt.1} parent=1 // pred_region
      _
    $region9: #{adapt.1} parent=1 // pred_fallthru
      _
    // Predicated region
    $region10: #{adapt.1} parent=1 // pred_check
      _
    $region11: #{adapt.1} parent=1 // pred_check_branch
      %17 = sbr.rel (0) target = $region13
    $region12: #{adapt.1} parent=1 // pred_region
      _
    $region13: #{adapt.1} parent=1 // pred_fallthru
      _
    // Predicated region
    $region14: #{adapt.1} parent=1 // pred_check
      _
    $region15: #{adapt.1} parent=1 // pred_check_branch
      %19 = sbr.rel (0) target = $region17
    $region16: #{adapt.1} parent=1 // pred_region
      _
    $region17: #{adapt.1} parent=1 // pred_fallthru
      _
    // Predicated region
    $region18: #{adapt.1} parent=1 // pred_check
      _
    $region19: #{adapt.1} parent=1 // pred_check_branch
      %21 = sbr.rel (0) target = $region21
    $region20: #{adapt.1} parent=1 // pred_region
      _
    $region21: #{adapt.1} parent=1 // pred_fallthru
      _
    // Predicated region
    $region22: #{adapt.1} parent=1 // pred_check
      _
    $region23: #{adapt.1} parent=1 // pred_check_branch
      %23 = sbr.rel (0) target = $region25
    $region24: #{adapt.1} parent=1 // pred_region
      _
    $region25: #{adapt.1} parent=1 // pred_fallthru
      _
    %v24 = vld [vmem:[%s0] sm:$0xff]
    %v25 = vld [vmem:[%s0 + $0x8] sm:$0xff]
    %v26 = vld [vmem:[%s0 + $0x10] sm:$0xff]
    %v27 = vld [vmem:[%s0 + $0x18] sm:$0x1]
    %v28 = vld [vmem:[%s1] sm:$0x1f]
    %v29 = vld [vmem:[%s4] sm:$0x1f]
    %v30 = vld [vmem:[%s5] sm:$0x1f]
    loop: start=0, step=1, limit=700
    $region26: #{adapt.1} parent=1 // loop_pre_header
      _
    $region27: #{adapt.1} parent=1 // loop_header
      %s32 = sphi 0, %s36
      %p33 = scmp.ge.s32.totalorder %s32, 700
      %v37 = vphi %v29, %v166
      %v38 = vphi %v30, %v168
      %v39 = vphi 0.0, %v160
      %v40 = vphi 0.0, %v164
    $region28: #{adapt.1} parent=1 // loop_header_branch
      %35 = sbr.rel (%p33) target = $region32
    $region29: #{adapt.1} parent=1 // loop_body
      %42 = vset.pattern.permute.xlu0 0
      %43 = vperm.xlu0 %42, %v38
      %v44 = vpop.permute.xlu0 %43
      %vm46 = vcmask 523264
      %v48 = vsel %vm46, %v37, 0
      %v51 = vsel %vm46, %v24, 0
      %v54 = vsel %vm46, %v25, 0
      %v57 = vsel %vm46, %v26, 0
      %v60 = vsel %vm46, %v27, 0
      %62 = vmatpush.xpose.msra.mxu0 0.0
      %63 = vmatpush.xpose.msra.mxu0 0.0
      %64 = vmatpush.xpose.msra.mxu0 0.0
      %65 = vmatpush.xpose.msra.mxu0 0.0
      %66 = vmatpush.xpose.msra.mxu0 0.0
      %67 = vmatpush.xpose.msra.mxu0 0.0
      %68 = vmatpush.xpose.msra.mxu0 0.0
      %69 = vmatpush.xpose.msra.mxu0 0.0
      %70 = vmatpush.xpose.msra.mxu0 0.0
      %71 = vmatpush.xpose.msra.mxu0 0.0
      %72 = vmatpush.xpose.msra.mxu0 0.0
      %73 = vmatpush.xpose.msra.mxu0 0.0
      %74 = vmatpush.xpose.msra.mxu0 %v60
      %75 = vmatpush.xpose.msra.mxu0 %v57
      %76 = vmatpush.xpose.msra.mxu0 %v54
      %77 = vmatpush.xpose.msra.mxu0 %v51
      %78 = vmatmul.f32.gmra.mxu0 %v48
      %v79 = vpop.f32.mrf.mxu0
      %v80 = vadd.f32 %v44, %v79
      %81 = vdwg.mxu0
      %vm82 = vcmask 200704
      %v83 = vsel %vm82, %v80, -inf
      %v84 = vrot.slane %v83, 4
      %v85 = vmax.f32 %v83, %v84
      %v86 = vrot.slane %v85, 2
      %v87 = vmax.f32 %v85, %v86
      %v88 = vrot.slane %v87, 1
      %v89 = vmax.f32 %v87, %v88
      %v90 = vsub.f32 %v80, %v89
      %v91 = vmul.f32 %v90, 1.442695
      %v92 = vpow.pop %v91
      %v93 = vsel %vm82, %v92, 0.0
      %v94 = vrot.slane %v93, 4
      %v95 = vadd.f32 %v93, %v94
      %v96 = vrot.slane %v95, 2
      %v97 = vadd.f32 %v95, %v96
      %v98 = vrot.slane %v97, 1
      %v99 = vadd.f32 %v97, %v98
      %v100 = vrcp.pop %v99
      %v101 = vmul.f32 %v99, %v100
      %v102 = vsub.f32 1.0, %v101
      %v103 = vmul.f32 %v100, %v102
      %v104 = vadd.f32 %v100, %v103
      %vm105 = vweird.f32 %v99
      %vm106 = vweird.f32 %v100
      %vm107 = vmor %vm105, %vm106
      %v108 = vsel %vm107, %v100, %v104
      %v109 = vand.u32 2147483647, %v99
      %vm110 = vcmp.eq.f32.partialorder %v109, 8.507059e+37
      %v111 = vand.u32 %v99, 2147483648
      %v112 = vor.u32 1.1754944e-38, %v111
      %v113 = vsel %vm110, %v112, %v108
      %v114 = vmul.f32 %v92, %v113
      %s115 = scalar_lea.vmem %s2, %s32
      %v116 = vld [vmem:[%s115] sm:$0x1]
      %v117 = vsub.f32 %v114, %v28
      %v118 = vperm.slane %v116, 0
      %v119 = vmul.f32 %v117, %v118
      %v120 = vsel %vm82, %v119, 0.0
      %121 = vadd.xlane.f32.xlu0 %v120
      %v122 = vpop.xlane.xlu0 %121
      %v123 = vmul.f32 %v37, 0.001
      %vm124 = vcmask 203776
      %v126 = vsel %vm124, %v119, 0
      %vm128 = vcmask 1040384
      %v129 = vsel %vm128, %v27, 0
      %131 = vmatpush.msra.mxu0 0.0
      %132 = vmatpush.msra.mxu0 0.0
      %133 = vmatpush.msra.mxu0 0.0
      %134 = vmatpush.msra.mxu0 0.0
      %135 = vmatpush.msra.mxu0 0.0
      %136 = vmatpush.msra.mxu0 0.0
      %137 = vmatpush.msra.mxu0 0.0
      %138 = vmatpush.msra.mxu0 0.0
      %139 = vmatpush.msra.mxu0 0.0
      %140 = vmatpush.msra.mxu0 0.0
      %141 = vmatpush.msra.mxu0 0.0
      %142 = vmatpush.msra.mxu0 0.0
      %143 = vmatpush.msra.mxu0 %v129
      %144 = vmatpush.msra.mxu0 %v26
      %145 = vmatpush.msra.mxu0 %v25
      %146 = vmatpush.msra.mxu0 %v24
      %147 = vmatmul.f32.gmra.mxu0 %v126
      %v148 = vpop.f32.mrf.mxu0
      %v149 = vadd.f32 %v123, %v148
      %150 = vdwg.mxu0
      %v151 = vmul.f32 %v38, 0.001
      %v152 = vadd.f32 %v122, %v151
      %p153 = scmp.eq.s32.totalorder %s32, 0
      %v154 = vmul.f32 %v39, 0.9
      %v155 = vmul.f32 %v149, 0.1
      %v156 = vadd.f32 %v154, %v155
      %s157 = scalar_select %p153, 1, 0
      %v158 = vstv %s157
      %vm159 = vcmp.eq.s32.totalorder %v158, 1
      %v160 = vsel %vm159, %v149, %v156
      %v161 = vmul.f32 %v40, 0.9
      %v162 = vmul.f32 %v152, 0.1
      %v163 = vadd.f32 %v161, %v162
      %v164 = vsel %vm159, %v152, %v163
      %v165 = vmul.f32 %v160, 0.01
      %v166 = vsub.f32 %v37, %v165
      %v167 = vmul.f32 %v164, 0.01
      %v168 = vsub.f32 %v38, %v167
    $region30: #{adapt.1} parent=1 // loop_footer
      %s36 = sadd.s32 1, %s32
    $region31: #{adapt.1} parent=1 // loop_footer_branch
      %31 = sbr.rel target = $region27
    $region32: #{adapt.1} parent=1 // loop_exit
      _
    %v169 = vld [vmem:[%s3] sm:$0xff]
    %v170 = vld [vmem:[%s3 + $0x8] sm:$0x7f]
    %172 = vset.pattern.permute.xlu0 0
    %173 = vperm.xlu0 %172, %v38
    %v174 = vpop.permute.xlu0 %173
    %vm176 = vcmask 523264
    %v178 = vsel %vm176, %v37, 0
    %v181 = vsel %vm176, %v169, 0
    %v184 = vsel %vm176, %v170, 0
    %186 = vmatpush.xpose.msra.mxu0 0.0
    %187 = vmatpush.xpose.msra.mxu0 0.0
    %188 = vmatpush.xpose.msra.mxu0 0.0
    %189 = vmatpush.xpose.msra.mxu0 0.0
    %190 = vmatpush.xpose.msra.mxu0 0.0
    %191 = vmatpush.xpose.msra.mxu0 0.0
    %192 = vmatpush.xpose.msra.mxu0 0.0
    %193 = vmatpush.xpose.msra.mxu0 0.0
    %194 = vmatpush.xpose.msra.mxu0 0.0
    %195 = vmatpush.xpose.msra.mxu0 0.0
    %196 = vmatpush.xpose.msra.mxu0 0.0
    %197 = vmatpush.xpose.msra.mxu0 0.0
    %198 = vmatpush.xpose.msra.mxu0 0.0
    %199 = vmatpush.xpose.msra.mxu0 0.0
    %200 = vmatpush.xpose.msra.mxu0 %v184
    %201 = vmatpush.xpose.msra.mxu0 %v181
    %202 = vmatmul.f32.gmra.mxu0 %v178
    %v203 = vpop.f32.mrf.mxu0
    %v204 = vadd.f32 %v174, %v203
    %205 = vdwg.mxu0
    %vm206 = vcmask 118784
    %207 = vst.msk [vmem:[#allocation2] sm:$0x1f] %vm206, %v204
    // Predicated region
    $region33: #{adapt.1} parent=1 // pred_check
      _
    $region34: #{adapt.1} parent=1 // pred_check_branch
      %209 = sbr.rel (0) target = $region36
    $region35: #{adapt.1} parent=1 // pred_region
      %211 = vsyncadd [#allocation3], 0
      %s213 = sshll.u32 [#allocation2], 4
      %s214 = int_to_ptr.vmem [resolvable:$true] %s213
      %s215 = sshll.u32 %s6, 4
      %s216 = int_to_ptr.hbm [resolvable:$true] %s215
      %218 = dma.vmem_to_hbm [thread:$0]  %s214, 128, %s216, [#allocation3]
    $region36: #{adapt.1} parent=1 // pred_fallthru
      _
    // Predicated region
    $region37: #{adapt.1} parent=1 // pred_check
      _
    $region38: #{adapt.1} parent=1 // pred_check_branch
      %220 = sbr.rel (0) target = $region40
    $region39: #{adapt.1} parent=1 // pred_region
      %222 = dma.done [#allocation3], 128
    $region40: #{adapt.1} parent=1 // pred_fallthru
      _
    %223 = vsyncpa [#allocation3], 1

</llo_original>
